<compile_context>
chip_gen: v5e
topology: v5e:2x2
jax: 0.10.0
libtpu: 0.0.40
codegen_flags: <defaults>
</compile_context>

<pallas_src>
import jax
import jax.numpy as jnp
from jax.experimental import pallas as pl
from jax.experimental.pallas import tpu as pltpu

H1, H2 = 400, 300


def critic_kernel(s_ref, a_ref, w1s_ref, w1a_ref, b1_ref,
                  w2_ref, b2_ref, w3_ref, b3_ref, o_ref):
    # Layer 1: split-input matmul (avoids a concat), bf16 MXU, f32 accumulate.
    s = s_ref[...].astype(jnp.bfloat16)                      # (TB, state_dim)
    a = a_ref[...].astype(jnp.bfloat16)                      # (TB, action_dim)
    h1 = (jnp.dot(s, w1s_ref[...], preferred_element_type=jnp.float32)
          + jnp.dot(a, w1a_ref[...], preferred_element_type=jnp.float32)
          + b1_ref[...])                                     # (TB, H1) f32
    h1 = jnp.maximum(h1, 0.0).astype(jnp.bfloat16)

    # Layer 2: bf16 MXU, f32 accumulate, ReLU in f32.
    h2 = jnp.dot(h1, w2_ref[...], preferred_element_type=jnp.float32) + b2_ref[...]
    h2 = jnp.maximum(h2, 0.0)                                # (TB, H2) f32

    # Layer 3 (out_features == 1): VPU broadcast-mul + cross-lane reduce
    # instead of a nearly-empty MXU pass.
    o_ref[...] = jnp.sum(h2 * w3_ref[...], axis=-1, keepdims=True) + b3_ref[...]


def critic_forward(state, action, params, *, max_tb=256):
    """state: (B, state_dim) f32, action: (B, action_dim) f32 -> (B, 1) f32."""
    w1s, w1a, b1, w2, b2, w3, b3 = params
    B, state_dim = state.shape
    action_dim = action.shape[1]

    # Batch tile: multiple of 8, capped so intermediates stay small in VMEM.
    TB = min(max_tb, ((B + 7) // 8) * 8)
    Bp = pl.cdiv(B, TB) * TB
    if Bp != B:
        pad = Bp - B
        state = jnp.pad(state, ((0, pad), (0, 0)))
        action = jnp.pad(action, ((0, pad), (0, 0)))

    grid = (Bp // TB,)
    resident = lambda i: (0, 0)       # weights/bias: same block every step -> stay resident
    batched = lambda i: (i, 0)

    flops = 2 * Bp * (state_dim * H1 + action_dim * H1 + H1 * H2 + H2)
    bytes_accessed = (Bp * (state_dim + action_dim) * 4            # inputs (f32)
                      + (state_dim + action_dim) * H1 * 2          # W1 (bf16)
                      + H1 * H2 * 2                                # W2 (bf16)
                      + (H1 + H2 + H2 + 1) * 4                     # biases + w3 (f32)
                      + Bp * 4)                                    # output

    out = pl.pallas_call(
        critic_kernel,
        out_shape=jax.ShapeDtypeStruct((Bp, 1), jnp.float32),
        grid=grid,
        in_specs=[
            pl.BlockSpec((TB, state_dim), batched),    # state
            pl.BlockSpec((TB, action_dim), batched),   # action
            pl.BlockSpec((state_dim, H1), resident),   # W1_s (bf16)
            pl.BlockSpec((action_dim, H1), resident),  # W1_a (bf16)
            pl.BlockSpec((1, H1), resident),           # b1   (f32)
            pl.BlockSpec((H1, H2), resident),          # W2   (bf16)
            pl.BlockSpec((1, H2), resident),           # b2   (f32)
            pl.BlockSpec((1, H2), resident),           # w3 row (f32)
            pl.BlockSpec((1, 1), resident),            # b3   (f32)
        ],
        out_specs=pl.BlockSpec((TB, 1), batched),
        compiler_params=pltpu.CompilerParams(
            dimension_semantics=("parallel",)),
        cost_estimate=pl.CostEstimate(
            flops=flops, bytes_accessed=bytes_accessed, transcendentals=0),
    )(state, action, w1s, w1a, b1, w2, b2, w3, b3)

    return out[:B] if Bp != B else out


def init_critic_params(key, state_dim, action_dim):
    """PyTorch nn.Linear-style init (U[-1/sqrt(fan_in), +]); W1 pre-split,
    big weights stored bf16, biases + last-layer row kept f32."""
    k = state_dim + action_dim

    key, kw1, kb1 = jax.random.split(key, 3)
    bound1 = 1.0 / jnp.sqrt(k)
    w1 = jax.random.uniform(kw1, (k, H1), jnp.float32, -bound1, bound1)
    b1 = jax.random.uniform(kb1, (1, H1), jnp.float32, -bound1, bound1)
    w1s = w1[:state_dim].astype(jnp.bfloat16)
    w1a = w1[state_dim:].astype(jnp.bfloat16)

    key, kw2, kb2 = jax.random.split(key, 3)
    bound2 = 1.0 / jnp.sqrt(H1)
    w2 = jax.random.uniform(kw2, (H1, H2), jnp.float32, -bound2, bound2).astype(jnp.bfloat16)
    b2 = jax.random.uniform(kb2, (1, H2), jnp.float32, -bound2, bound2)

    key, kw3, kb3 = jax.random.split(key, 3)
    bound3 = 1.0 / jnp.sqrt(H2)
    w3 = jax.random.uniform(kw3, (1, H2), jnp.float32, -bound3, bound3)   # row vector
    b3 = jax.random.uniform(kb3, (1, 1), jnp.float32, -bound3, bound3)

    return (w1s, w1a, b1, w2, b2, w3, b3)


if __name__ == "__main__":
    key = jax.random.PRNGKey(0)
    state_dim, action_dim, batch = 16, 4, 8

    k1, k2, k3 = jax.random.split(key, 3)
    state = jax.random.normal(k1, (batch, state_dim), jnp.float32)
    action = jax.random.normal(k2, (batch, action_dim), jnp.float32)
    params = init_critic_params(k3, state_dim, action_dim)

    q = critic_forward(state, action, params)
    jax.block_until_ready(q)

    # Reference in plain JAX with identical dtypes / math.
    w1s, w1a, b1, w2, b2, w3, b3 = params
    sb = state.astype(jnp.bfloat16)
    ab = action.astype(jnp.bfloat16)
    h1 = jnp.maximum(
        jnp.dot(sb, w1s, preferred_element_type=jnp.float32)
        + jnp.dot(ab, w1a, preferred_element_type=jnp.float32) + b1, 0.0)
    h1 = h1.astype(jnp.bfloat16)
    h2 = jnp.maximum(jnp.dot(h1, w2, preferred_element_type=jnp.float32) + b2, 0.0)
    ref = jnp.sum(h2 * w3, axis=-1, keepdims=True) + b3

    assert q.shape == (batch, 1)
    assert jnp.allclose(q, ref, atol=1e-2, rtol=1e-2)

    print("KERNEL_OK")
</pallas_src>

<mosaic_0001>
module attributes {stable_mosaic.version = 11 : i64} {
  func.func @critic_kernel(%arg0: i32, %arg1: memref<8x16xf32, #tpu.memory_space<vmem>>, %arg2: memref<8x4xf32, #tpu.memory_space<vmem>>, %arg3: memref<16x400xbf16, #tpu.memory_space<vmem>>, %arg4: memref<4x400xbf16, #tpu.memory_space<vmem>>, %arg5: memref<1x400xf32, #tpu.memory_space<vmem>>, %arg6: memref<400x300xbf16, #tpu.memory_space<vmem>>, %arg7: memref<1x300xf32, #tpu.memory_space<vmem>>, %arg8: memref<1x300xf32, #tpu.memory_space<vmem>>, %arg9: memref<1x1xf32, #tpu.memory_space<vmem>>, %arg10: memref<8x1xf32, #tpu.memory_space<vmem>>) attributes {dimension_semantics = [#tpu.dimension_semantics<parallel>], iteration_bounds = array<i64: 1>, scalar_prefetch = 0 : i64, scratch_operands = 0 : i64, tpu.core_type = #tpu.core_type<tc>, window_params = [{transform_indices = @transform_0, window_bounds = array<i64: 8, 16>}, {transform_indices = @transform_1, window_bounds = array<i64: 8, 4>}, {pipeline_mode = #tpu.pipeline_mode<synchronous>, transform_indices = @transform_2, window_bounds = array<i64: 16, 400>}, {pipeline_mode = #tpu.pipeline_mode<synchronous>, transform_indices = @transform_3, window_bounds = array<i64: 4, 400>}, {pipeline_mode = #tpu.pipeline_mode<synchronous>, transform_indices = @transform_4, window_bounds = array<i64: 1, 400>}, {pipeline_mode = #tpu.pipeline_mode<synchronous>, transform_indices = @transform_5, window_bounds = array<i64: 400, 300>}, {pipeline_mode = #tpu.pipeline_mode<synchronous>, transform_indices = @transform_6, window_bounds = array<i64: 1, 300>}, {pipeline_mode = #tpu.pipeline_mode<synchronous>, transform_indices = @transform_7, window_bounds = array<i64: 1, 300>}, {pipeline_mode = #tpu.pipeline_mode<synchronous>, transform_indices = @transform_8, window_bounds = array<i64: 1, 1>}, {transform_indices = @transform_9, window_bounds = array<i64: 8, 1>}]} {
    %c0 = arith.constant 0 : index
    %c0_0 = arith.constant 0 : index
    %0 = vector.load %arg1[%c0, %c0_0] : memref<8x16xf32, #tpu.memory_space<vmem>>, vector<8x16xf32>
    %1 = arith.truncf %0 : vector<8x16xf32> to vector<8x16xbf16>
    %c0_1 = arith.constant 0 : index
    %c0_2 = arith.constant 0 : index
    %2 = vector.load %arg2[%c0_1, %c0_2] : memref<8x4xf32, #tpu.memory_space<vmem>>, vector<8x4xf32>
    %3 = arith.truncf %2 : vector<8x4xf32> to vector<8x4xbf16>
    %c0_3 = arith.constant 0 : index
    %c0_4 = arith.constant 0 : index
    %4 = vector.load %arg3[%c0_3, %c0_4] : memref<16x400xbf16, #tpu.memory_space<vmem>>, vector<16x400xbf16>
    %cst = arith.constant dense<0.000000e+00> : vector<8x400xf32>
    %5 = tpu.matmul %1, %4, %cst {dimension_numbers = #tpu.dot_dimension_numbers<[1], [0], [0], [1], [0, 0, 1, 1], [], []>} : vector<8x16xbf16>, vector<16x400xbf16>, vector<8x400xf32> -> vector<8x400xf32>
    %c0_5 = arith.constant 0 : index
    %c0_6 = arith.constant 0 : index
    %6 = vector.load %arg4[%c0_5, %c0_6] : memref<4x400xbf16, #tpu.memory_space<vmem>>, vector<4x400xbf16>
    %cst_7 = arith.constant dense<0.000000e+00> : vector<8x400xf32>
    %7 = tpu.matmul %3, %6, %cst_7 {dimension_numbers = #tpu.dot_dimension_numbers<[1], [0], [0], [1], [0, 0, 1, 1], [], []>} : vector<8x4xbf16>, vector<4x400xbf16>, vector<8x400xf32> -> vector<8x400xf32>
    %8 = arith.addf %5, %7 : vector<8x400xf32>
    %c0_8 = arith.constant 0 : index
    %c0_9 = arith.constant 0 : index
    %9 = vector.load %arg5[%c0_8, %c0_9] : memref<1x400xf32, #tpu.memory_space<vmem>>, vector<1x400xf32>
    %10 = vector.broadcast %9 : vector<1x400xf32> to vector<8x400xf32>
    %11 = arith.addf %8, %10 : vector<8x400xf32>
    %cst_10 = arith.constant 0.000000e+00 : f32
    %12 = vector.broadcast %cst_10 : f32 to vector<8x400xf32>
    %13 = arith.maximumf %11, %12 : vector<8x400xf32>
    %14 = arith.truncf %13 : vector<8x400xf32> to vector<8x400xbf16>
    %c0_11 = arith.constant 0 : index
    %c0_12 = arith.constant 0 : index
    %15 = vector.load %arg6[%c0_11, %c0_12] : memref<400x300xbf16, #tpu.memory_space<vmem>>, vector<400x300xbf16>
    %cst_13 = arith.constant dense<0.000000e+00> : vector<8x300xf32>
    %16 = tpu.matmul %14, %15, %cst_13 {dimension_numbers = #tpu.dot_dimension_numbers<[1], [0], [0], [1], [0, 0, 1, 1], [], []>} : vector<8x400xbf16>, vector<400x300xbf16>, vector<8x300xf32> -> vector<8x300xf32>
    %c0_14 = arith.constant 0 : index
    %c0_15 = arith.constant 0 : index
    %17 = vector.load %arg7[%c0_14, %c0_15] : memref<1x300xf32, #tpu.memory_space<vmem>>, vector<1x300xf32>
    %18 = vector.broadcast %17 : vector<1x300xf32> to vector<8x300xf32>
    %19 = arith.addf %16, %18 : vector<8x300xf32>
    %cst_16 = arith.constant 0.000000e+00 : f32
    %20 = vector.broadcast %cst_16 : f32 to vector<8x300xf32>
    %21 = arith.maximumf %19, %20 : vector<8x300xf32>
    %c0_17 = arith.constant 0 : index
    %c0_18 = arith.constant 0 : index
    %22 = vector.load %arg8[%c0_17, %c0_18] : memref<1x300xf32, #tpu.memory_space<vmem>>, vector<1x300xf32>
    %23 = vector.broadcast %22 : vector<1x300xf32> to vector<8x300xf32>
    %24 = arith.mulf %21, %23 : vector<8x300xf32>
    %cst_19 = arith.constant dense<0.000000e+00> : vector<8xf32>
    %25 = vector.multi_reduction <add>, %24, %cst_19 [1] : vector<8x300xf32> to vector<8xf32>
    %26 = vector.shape_cast %25 : vector<8xf32> to vector<8x1xf32>
    %c0_20 = arith.constant 0 : index
    %c0_21 = arith.constant 0 : index
    %27 = vector.load %arg9[%c0_20, %c0_21] : memref<1x1xf32, #tpu.memory_space<vmem>>, vector<1x1xf32>
    %28 = vector.broadcast %27 : vector<1x1xf32> to vector<8x1xf32>
    %29 = arith.addf %26, %28 : vector<8x1xf32>
    %c0_22 = arith.constant 0 : index
    %c0_23 = arith.constant 0 : index
    %30 = vector.load %arg10[%c0_22, %c0_23] : memref<8x1xf32, #tpu.memory_space<vmem>>, vector<8x1xf32>
    tpu.vector_store %arg10[%c0_22, %c0_23], %29 {strides = array<i32>} : memref<8x1xf32, #tpu.memory_space<vmem>>, vector<8x1xf32>,
    return
  }
  func.func @transform_0(%arg0: i32) -> (i32, i32) {
    %c0_i32 = arith.constant 0 : i32
    %c0_i32_0 = arith.constant 0 : i32
    return %arg0, %c0_i32 : i32, i32
  }
  func.func @transform_1(%arg0: i32) -> (i32, i32) {
    %c0_i32 = arith.constant 0 : i32
    %c0_i32_0 = arith.constant 0 : i32
    return %arg0, %c0_i32 : i32, i32
  }
  func.func @transform_2(%arg0: i32) -> (i32, i32) {
    %c0_i32 = arith.constant 0 : i32
    %c0_i32_0 = arith.constant 0 : i32
    %c0_i32_1 = arith.constant 0 : i32
    return %c0_i32, %c0_i32_0 : i32, i32
  }
  func.func @transform_3(%arg0: i32) -> (i32, i32) {
    %c0_i32 = arith.constant 0 : i32
    %c0_i32_0 = arith.constant 0 : i32
    %c0_i32_1 = arith.constant 0 : i32
    return %c0_i32, %c0_i32_0 : i32, i32
  }
  func.func @transform_4(%arg0: i32) -> (i32, i32) {
    %c0_i32 = arith.constant 0 : i32
    %c0_i32_0 = arith.constant 0 : i32
    %c0_i32_1 = arith.constant 0 : i32
    return %c0_i32, %c0_i32_0 : i32, i32
  }
  func.func @transform_5(%arg0: i32) -> (i32, i32) {
    %c0_i32 = arith.constant 0 : i32
    %c0_i32_0 = arith.constant 0 : i32
    %c0_i32_1 = arith.constant 0 : i32
    return %c0_i32, %c0_i32_0 : i32, i32
  }
  func.func @transform_6(%arg0: i32) -> (i32, i32) {
    %c0_i32 = arith.constant 0 : i32
    %c0_i32_0 = arith.constant 0 : i32
    %c0_i32_1 = arith.constant 0 : i32
    return %c0_i32, %c0_i32_0 : i32, i32
  }
  func.func @transform_7(%arg0: i32) -> (i32, i32) {
    %c0_i32 = arith.constant 0 : i32
    %c0_i32_0 = arith.constant 0 : i32
    %c0_i32_1 = arith.constant 0 : i32
    return %c0_i32, %c0_i32_0 : i32, i32
  }
  func.func @transform_8(%arg0: i32) -> (i32, i32) {
    %c0_i32 = arith.constant 0 : i32
    %c0_i32_0 = arith.constant 0 : i32
    %c0_i32_1 = arith.constant 0 : i32
    return %c0_i32, %c0_i32_0 : i32, i32
  }
  func.func @transform_9(%arg0: i32) -> (i32, i32) {
    %c0_i32 = arith.constant 0 : i32
    %c0_i32_0 = arith.constant 0 : i32
    return %arg0, %c0_i32 : i32, i32
  }
}

</mosaic_0001>

<llo_original>
// kernel: tpu_custom_call.1
$region0: #{tpu_custom_call.1}
  #allocation0 [shape = 'u32[]', space=smem, size = 0x4, offset = 0x4, fixed_abs, tag = 'smem constant byte address 0x4 - core index']
  #allocation1 [shape = 'u32[72,128]{1,0:T(1,128)}', space=vmem, size = 0x9000, scoped, tag = 'internal scratch']
  #allocation2 [shape = 'f32[1,1]{1,0:T(1,128)S(1)}', space=vmem, size = 0x200, scoped, tag = 'scoped memory for tpu_custom_call.1']
  %s0 = inlined_call_operand.vmem [shape: f32[8,16], index: 0, kind: input, shape index: {}]
  %s1 = inlined_call_operand.vmem [shape: f32[8,4], index: 1, kind: input, shape index: {}]
  %s2 = inlined_call_operand.hbm [shape: bf16[16,400], index: 2, kind: input, shape index: {}]
  %s3 = inlined_call_operand.vmem [shape: bf16[4,400], index: 3, kind: input, shape index: {}]
  %s4 = inlined_call_operand.hbm [shape: f32[1,400], index: 4, kind: input, shape index: {}]
  %s5 = inlined_call_operand.hbm [shape: bf16[400,300], index: 5, kind: input, shape index: {}]
  %s6 = inlined_call_operand.vmem [shape: f32[1,300], index: 6, kind: input, shape index: {}]
  %s7 = inlined_call_operand.hbm [shape: f32[1,300], index: 7, kind: input, shape index: {}]
  %s8 = inlined_call_operand.<no memory space> [shape: f32[1,1], index: 8, kind: input, shape index: {}]
  %s9 = inlined_call_operand.vmem [shape: f32[8,1], index: 9, kind: output, shape index: {}]
  %s10 = sld [smem:[#allocation0]]
  $region62: #{tpu_custom_call.1} parent=0
    _
  %s12 = ssub.s32 1, %s10
  %s13 = scalar_select 0, %s12, %s10
  %v14 = vstv %s8
  %15 = vst [vmem:[#allocation2] sm:$0x1] %v14
  $region1: #{tpu_custom_call.1} parent=0
    #allocation3 [shape = 'u8[16384]{0}', space=vmem, size = 0x4000, scoped, tag = 'input window, operand 2, single buffered']
    #allocation4 [shape = 's32[1]{0}', space=sflag, size = 0x4, scoped, tag = 'scoped memory for tpu_custom_call.1']
    #allocation5 [shape = 'u8[2048]{0}', space=vmem, size = 0x800, scoped, tag = 'input window, operand 4, single buffered']
    #allocation6 [shape = 's32[1]{0}', space=sflag, size = 0x4, scoped, tag = 'scoped memory for tpu_custom_call.1']
    #allocation7 [shape = 'u8[307200]{0}', space=vmem, size = 0x4b000, scoped, tag = 'input window, operand 5, single buffered']
    #allocation8 [shape = 'u8[1536]{0}', space=vmem, size = 0x800, scoped, tag = 'input window, operand 7, single buffered']
    #allocation9 [shape = 's32[1]{0}', space=sflag, size = 0x4, scoped, tag = 'scoped memory for tpu_custom_call.1']
    %16 = vsyncpa [#allocation4], 0
    %17 = vsyncpa [#allocation6], 0
    %18 = vsyncpa [#allocation9], 0
    // Predicated region
    $region2: #{tpu_custom_call.1} parent=1 // pred_check
      _
    $region3: #{tpu_custom_call.1} parent=1 // pred_check_branch
      %20 = sbr.rel (0) target = $region5
    $region4: #{tpu_custom_call.1} parent=1 // pred_region
      _
    $region5: #{tpu_custom_call.1} parent=1 // pred_fallthru
      _
    // Predicated region
    $region6: #{tpu_custom_call.1} parent=1 // pred_check
      _
    $region7: #{tpu_custom_call.1} parent=1 // pred_check_branch
      %22 = sbr.rel (0) target = $region9
    $region8: #{tpu_custom_call.1} parent=1 // pred_region
      _
    $region9: #{tpu_custom_call.1} parent=1 // pred_fallthru
      _
    // Predicated region
    $region10: #{tpu_custom_call.1} parent=1 // pred_check
      _
    $region11: #{tpu_custom_call.1} parent=1 // pred_check_branch
      %24 = sbr.rel (0) target = $region13
    $region12: #{tpu_custom_call.1} parent=1 // pred_region
      %26 = vsyncadd [#allocation4], 0
      %s27 = sshll.u32 %s2, 4
      %s28 = int_to_ptr.hbm [resolvable:$true] %s27
      %s29 = sshll.u32 [#allocation3], 4
      %s30 = int_to_ptr.vmem [resolvable:$true] %s29
      %35 = dma.hbm_to_vmem [thread:$0]  %s28, 512, %s30, [#allocation4], 256, 256, 16
    $region13: #{tpu_custom_call.1} parent=1 // pred_fallthru
      _
    // Predicated region
    $region14: #{tpu_custom_call.1} parent=1 // pred_check
      _
    $region15: #{tpu_custom_call.1} parent=1 // pred_check_branch
      %37 = sbr.rel (0) target = $region17
    $region16: #{tpu_custom_call.1} parent=1 // pred_region
      _
    $region17: #{tpu_custom_call.1} parent=1 // pred_fallthru
      _
    // Predicated region
    $region18: #{tpu_custom_call.1} parent=1 // pred_check
      _
    $region19: #{tpu_custom_call.1} parent=1 // pred_check_branch
      %39 = sbr.rel (0) target = $region21
    $region20: #{tpu_custom_call.1} parent=1 // pred_region
      %41 = vsyncadd [#allocation6], 0
      %s43 = sshll.u32 %s4, 4
      %s44 = int_to_ptr.hbm [resolvable:$true] %s43
      %s45 = sshll.u32 [#allocation5], 4
      %s46 = int_to_ptr.vmem [resolvable:$true] %s45
      %48 = dma.hbm_to_vmem [thread:$0]  %s44, 64, %s46, [#allocation6]
    $region21: #{tpu_custom_call.1} parent=1 // pred_fallthru
      _
    // Predicated region
    $region22: #{tpu_custom_call.1} parent=1 // pred_check
      _
    $region23: #{tpu_custom_call.1} parent=1 // pred_check_branch
      %50 = sbr.rel (0) target = $region25
    $region24: #{tpu_custom_call.1} parent=1 // pred_region
      %52 = vsyncadd [#allocation6], 0
      %s53 = sshll.u32 %s5, 4
      %s54 = int_to_ptr.hbm [resolvable:$true] %s53
      %s55 = sshll.u32 [#allocation7], 4
      %s56 = int_to_ptr.vmem [resolvable:$true] %s55
      %61 = dma.hbm_to_vmem [thread:$0]  %s54, 9600, %s56, [#allocation6], 192, 192, 12
    $region25: #{tpu_custom_call.1} parent=1 // pred_fallthru
      _
    // Predicated region
    $region26: #{tpu_custom_call.1} parent=1 // pred_check
      _
    $region27: #{tpu_custom_call.1} parent=1 // pred_check_branch
      %63 = sbr.rel (0) target = $region29
    $region28: #{tpu_custom_call.1} parent=1 // pred_region
      _
    $region29: #{tpu_custom_call.1} parent=1 // pred_fallthru
      _
    // Predicated region
    $region30: #{tpu_custom_call.1} parent=1 // pred_check
      _
    $region31: #{tpu_custom_call.1} parent=1 // pred_check_branch
      %65 = sbr.rel (0) target = $region33
    $region32: #{tpu_custom_call.1} parent=1 // pred_region
      %67 = vsyncadd [#allocation9], 0
      %s69 = sshll.u32 %s7, 4
      %s70 = int_to_ptr.hbm [resolvable:$true] %s69
      %s71 = sshll.u32 [#allocation8], 4
      %s72 = int_to_ptr.vmem [resolvable:$true] %s71
      %74 = dma.hbm_to_vmem [thread:$0]  %s70, 48, %s72, [#allocation9]
    $region33: #{tpu_custom_call.1} parent=1 // pred_fallthru
      _
    // Predicated region
    $region34: #{tpu_custom_call.1} parent=1 // pred_check
      _
    $region35: #{tpu_custom_call.1} parent=1 // pred_check_branch
      %76 = sbr.rel (0) target = $region37
    $region36: #{tpu_custom_call.1} parent=1 // pred_region
      _
    $region37: #{tpu_custom_call.1} parent=1 // pred_fallthru
      _
    // Predicated region
    $region38: #{tpu_custom_call.1} parent=1 // pred_check
      _
    $region39: #{tpu_custom_call.1} parent=1 // pred_check_branch
      %78 = sbr.rel (0) target = $region41
    $region40: #{tpu_custom_call.1} parent=1 // pred_region
      %80 = dma.done [#allocation4], 512
    $region41: #{tpu_custom_call.1} parent=1 // pred_fallthru
      _
    // Predicated region
    $region42: #{tpu_custom_call.1} parent=1 // pred_check
      _
    $region43: #{tpu_custom_call.1} parent=1 // pred_check_branch
      %82 = sbr.rel (0) target = $region45
    $region44: #{tpu_custom_call.1} parent=1 // pred_region
      %84 = dma.done [#allocation6], 64
    $region45: #{tpu_custom_call.1} parent=1 // pred_fallthru
      _
    // Predicated region
    $region46: #{tpu_custom_call.1} parent=1 // pred_check
      _
    $region47: #{tpu_custom_call.1} parent=1 // pred_check_branch
      %86 = sbr.rel (0) target = $region49
    $region48: #{tpu_custom_call.1} parent=1 // pred_region
      %88 = dma.done [#allocation6], 9600
    $region49: #{tpu_custom_call.1} parent=1 // pred_fallthru
      _
    // Predicated region
    $region50: #{tpu_custom_call.1} parent=1 // pred_check
      _
    $region51: #{tpu_custom_call.1} parent=1 // pred_check_branch
      %90 = sbr.rel (0) target = $region53
    $region52: #{tpu_custom_call.1} parent=1 // pred_region
      %92 = dma.done [#allocation9], 48
    $region53: #{tpu_custom_call.1} parent=1 // pred_fallthru
      _
    %v94 = vld [vmem:[%s0] sm:$0xff]
    %v95 = vpack.c.bf16 %v94, %v94
    %v96 = vld [vmem:[%s1] sm:$0xff]
    %v97 = vpack.c.bf16 %v96, %v96
    %v98 = vld [vmem:[#allocation3] sm:$0xff]
    %v99 = vld [vmem:[#allocation3 + $0x8] sm:$0xff]
    %v100 = vld [vmem:[#allocation3 + $0x10] sm:$0xff]
    %v101 = vld [vmem:[#allocation3 + $0x18] sm:$0xff]
    %v102 = vld [vmem:[%s3] sm:$0xff]
    %104 = vst [vmem:[#allocation1] ss:$4 sm:$0xff] %v102
    %v105 = vld.sshfl [vmem:[#allocation1] sm:$0xff pattern:$0x73625140]
    %v106 = vld.sshfl [vmem:[#allocation1 + $0x8] sm:$0xff pattern:$0x73625140]
    %v107 = vld.sshfl [vmem:[#allocation1 + $0x10] sm:$0xff pattern:$0x73625140]
    %v108 = vld.sshfl [vmem:[#allocation1 + $0x18] sm:$0xff pattern:$0x73625140]
    %vm109 = vcmask 31744
    %v111 = vsel %vm109, %v97, 0
    %vm113 = vcmask 1041408
    %v114 = vsel %vm113, %v105, 0
    %v116 = vsel %vm113, %v106, 0
    %v118 = vsel %vm113, %v107, 0
    %v120 = vsel %vm113, %v108, 0
    %122 = vmatpush.bf16.msra.mxu0 0
    %123 = vmatpush.bf16.msra.mxu0 0
    %124 = vmatpush.bf16.msra.mxu0 0
    %125 = vmatpush.bf16.msra.mxu0 0
    %126 = vmatpush.bf16.msra.mxu0 0
    %127 = vmatpush.bf16.msra.mxu0 0
    %128 = vmatpush.bf16.msra.mxu0 0
    %129 = vmatpush.bf16.msra.mxu0 %v114
    %130 = vmatmul.bf16.gmra.mxu0 %v111
    %v131 = vpop.f32.mrf.mxu0
    %v132 = vadd.f32 0.0, %v131
    %v133 = vpop.f32.mrf.mxu0
    %134 = vdwg.mxu0
    %135 = vmatpush.bf16.msra.mxu0 0
    %136 = vmatpush.bf16.msra.mxu0 0
    %137 = vmatpush.bf16.msra.mxu0 0
    %138 = vmatpush.bf16.msra.mxu0 0
    %139 = vmatpush.bf16.msra.mxu0 0
    %140 = vmatpush.bf16.msra.mxu0 0
    %141 = vmatpush.bf16.msra.mxu0 0
    %142 = vmatpush.bf16.msra.mxu0 %v116
    %143 = vmatmul.bf16.gmra.mxu0 %v111
    %v144 = vpop.f32.mrf.mxu0
    %v145 = vadd.f32 0.0, %v144
    %v146 = vpop.f32.mrf.mxu0
    %147 = vdwg.mxu0
    %148 = vmatpush.bf16.msra.mxu0 0
    %149 = vmatpush.bf16.msra.mxu0 0
    %150 = vmatpush.bf16.msra.mxu0 0
    %151 = vmatpush.bf16.msra.mxu0 0
    %152 = vmatpush.bf16.msra.mxu0 0
    %153 = vmatpush.bf16.msra.mxu0 0
    %154 = vmatpush.bf16.msra.mxu0 0
    %155 = vmatpush.bf16.msra.mxu0 %v118
    %156 = vmatmul.bf16.gmra.mxu0 %v111
    %v157 = vpop.f32.mrf.mxu0
    %v158 = vadd.f32 0.0, %v157
    %v159 = vpop.f32.mrf.mxu0
    %160 = vdwg.mxu0
    %161 = vmatpush.bf16.msra.mxu0 0
    %162 = vmatpush.bf16.msra.mxu0 0
    %163 = vmatpush.bf16.msra.mxu0 0
    %164 = vmatpush.bf16.msra.mxu0 0
    %165 = vmatpush.bf16.msra.mxu0 0
    %166 = vmatpush.bf16.msra.mxu0 0
    %167 = vmatpush.bf16.msra.mxu0 0
    %168 = vmatpush.bf16.msra.mxu0 %v120
    %169 = vmatmul.bf16.gmra.mxu0 %v111
    %v170 = vpop.f32.mrf.mxu0
    %v171 = vadd.f32 0.0, %v170
    %v172 = vpop.f32.mrf.mxu0
    %173 = vdwg.mxu0
    %v178 = vunpack.c.l.b16 %v98
    %v179 = vunpack.c.h.b16 %v98
    %v180 = vunpack.c.l.b16 %v99
    %v181 = vunpack.c.h.b16 %v99
    %v182 = vunpack.c.l.b16 %v100
    %v183 = vunpack.c.h.b16 %v100
    %v184 = vunpack.c.l.b16 %v101
    %v185 = vunpack.c.h.b16 %v101
    %v186 = vpack.c.b16 %v182, %v178
    %v187 = vpack.c.b16 %v183, %v179
    %v188 = vpack.c.b16 %v184, %v180
    %v189 = vpack.c.b16 %v185, %v181
    %vm194 = vcmask 130048
    %v196 = vsel %vm194, %v95, 0
    %198 = vmatpush.bf16.msra.mxu0 0
    %199 = vmatpush.bf16.msra.mxu0 0
    %200 = vmatpush.bf16.msra.mxu0 0
    %201 = vmatpush.bf16.msra.mxu0 0
    %202 = vmatpush.bf16.msra.mxu0 0
    %203 = vmatpush.bf16.msra.mxu0 0
    %204 = vmatpush.bf16.msra.mxu0 0
    %205 = vmatpush.bf16.msra.mxu0 %v186
    %206 = vmatmul.bf16.gmra.mxu0 %v196
    %v207 = vpop.f32.mrf.mxu0
    %v208 = vadd.f32 %v132, %v207
    %v209 = vpop.f32.mrf.mxu0
    %210 = vdwg.mxu0
    %211 = vmatpush.bf16.msra.mxu0 0
    %212 = vmatpush.bf16.msra.mxu0 0
    %213 = vmatpush.bf16.msra.mxu0 0
    %214 = vmatpush.bf16.msra.mxu0 0
    %215 = vmatpush.bf16.msra.mxu0 0
    %216 = vmatpush.bf16.msra.mxu0 0
    %217 = vmatpush.bf16.msra.mxu0 0
    %218 = vmatpush.bf16.msra.mxu0 %v187
    %219 = vmatmul.bf16.gmra.mxu0 %v196
    %v220 = vpop.f32.mrf.mxu0
    %v221 = vadd.f32 %v145, %v220
    %v222 = vpop.f32.mrf.mxu0
    %223 = vdwg.mxu0
    %224 = vmatpush.bf16.msra.mxu0 0
    %225 = vmatpush.bf16.msra.mxu0 0
    %226 = vmatpush.bf16.msra.mxu0 0
    %227 = vmatpush.bf16.msra.mxu0 0
    %228 = vmatpush.bf16.msra.mxu0 0
    %229 = vmatpush.bf16.msra.mxu0 0
    %230 = vmatpush.bf16.msra.mxu0 0
    %231 = vmatpush.bf16.msra.mxu0 %v188
    %232 = vmatmul.bf16.gmra.mxu0 %v196
    %v233 = vpop.f32.mrf.mxu0
    %v234 = vadd.f32 %v158, %v233
    %v235 = vpop.f32.mrf.mxu0
    %236 = vdwg.mxu0
    %237 = vmatpush.bf16.msra.mxu0 0
    %238 = vmatpush.bf16.msra.mxu0 0
    %239 = vmatpush.bf16.msra.mxu0 0
    %240 = vmatpush.bf16.msra.mxu0 0
    %241 = vmatpush.bf16.msra.mxu0 0
    %242 = vmatpush.bf16.msra.mxu0 0
    %243 = vmatpush.bf16.msra.mxu0 0
    %244 = vmatpush.bf16.msra.mxu0 %v189
    %245 = vmatmul.bf16.gmra.mxu0 %v196
    %v246 = vpop.f32.mrf.mxu0
    %v247 = vadd.f32 %v171, %v246
    %v248 = vpop.f32.mrf.mxu0
    %249 = vdwg.mxu0
    %v250 = vld [vmem:[#allocation5] sm:$0xf]
    %v252 = vperm.slane %v250, 0
    %v253 = vperm.slane %v250, 1
    %v254 = vperm.slane %v250, 2
    %v255 = vperm.slane %v250, 3
    %v260 = vadd.f32 %v208, %v252
    %v261 = vadd.f32 %v221, %v253
    %v262 = vadd.f32 %v234, %v254
    %v263 = vadd.f32 %v247, %v255
    %v264 = vmax.f32 %v260, 0.0
    %v265 = vmax.f32 %v261, 0.0
    %v266 = vmax.f32 %v262, 0.0
    %v267 = vmax.f32 %v263, 0.0
    %v268 = vpack.c.bf16 %v264, %v264
    %v269 = vpack.c.bf16 %v265, %v265
    %v270 = vpack.c.bf16 %v266, %v266
    %v271 = vpack.c.bf16 %v267, %v267
    %v272 = vld [vmem:[#allocation7] sm:$0xff]
    %v273 = vld [vmem:[#allocation7 + $0x8] sm:$0xf]
    %v274 = vld [vmem:[#allocation7 + $0xc] sm:$0xff]
    %v275 = vld [vmem:[#allocation7 + $0x14] sm:$0xf]
    %v276 = vld [vmem:[#allocation7 + $0x18] sm:$0xff]
    %v277 = vld [vmem:[#allocation7 + $0x20] sm:$0xf]
    %v278 = vld [vmem:[#allocation7 + $0x24] sm:$0xff]
    %v279 = vld [vmem:[#allocation7 + $0x2c] sm:$0xf]
    %v280 = vld [vmem:[#allocation7 + $0x30] sm:$0xff]
    %v281 = vld [vmem:[#allocation7 + $0x38] sm:$0xf]
    %v282 = vld [vmem:[#allocation7 + $0x3c] sm:$0xff]
    %v283 = vld [vmem:[#allocation7 + $0x44] sm:$0xf]
    %v284 = vld [vmem:[#allocation7 + $0x48] sm:$0xff]
    %v285 = vld [vmem:[#allocation7 + $0x50] sm:$0xf]
    %v286 = vld [vmem:[#allocation7 + $0x54] sm:$0xff]
    %v287 = vld [vmem:[#allocation7 + $0x5c] sm:$0xf]
    %v288 = vld [vmem:[#allocation7 + $0x60] sm:$0xff]
    %v289 = vld [vmem:[#allocation7 + $0x68] sm:$0xf]
    %v290 = vld [vmem:[#allocation7 + $0x6c] sm:$0xff]
    %v291 = vld [vmem:[#allocation7 + $0x74] sm:$0xf]
    %v292 = vld [vmem:[#allocation7 + $0x78] sm:$0xff]
    %v293 = vld [vmem:[#allocation7 + $0x80] sm:$0xf]
    %v294 = vld [vmem:[#allocation7 + $0x84] sm:$0xff]
    %v295 = vld [vmem:[#allocation7 + $0x8c] sm:$0xf]
    %v296 = vld [vmem:[#allocation7 + $0x90] sm:$0xff]
    %v297 = vld [vmem:[#allocation7 + $0x98] sm:$0xf]
    %v298 = vld [vmem:[#allocation7 + $0x9c] sm:$0xff]
    %v299 = vld [vmem:[#allocation7 + $0xa4] sm:$0xf]
    %v300 = vld [vmem:[#allocation7 + $0xa8] sm:$0xff]
    %v301 = vld [vmem:[#allocation7 + $0xb0] sm:$0xf]
    %v302 = vld [vmem:[#allocation7 + $0xb4] sm:$0xff]
    %v303 = vld [vmem:[#allocation7 + $0xbc] sm:$0xf]
    %v304 = vld [vmem:[#allocation7 + $0xc0] sm:$0xff]
    %v305 = vld [vmem:[#allocation7 + $0xc8] sm:$0xf]
    %v306 = vld [vmem:[#allocation7 + $0xcc] sm:$0xff]
    %v307 = vld [vmem:[#allocation7 + $0xd4] sm:$0xf]
    %v308 = vld [vmem:[#allocation7 + $0xd8] sm:$0xff]
    %v309 = vld [vmem:[#allocation7 + $0xe0] sm:$0xf]
    %v310 = vld [vmem:[#allocation7 + $0xe4] sm:$0xff]
    %v311 = vld [vmem:[#allocation7 + $0xec] sm:$0xf]
    %v312 = vld [vmem:[#allocation7 + $0xf0] sm:$0xff]
    %v313 = vld [vmem:[#allocation7 + $0xf8] sm:$0xf]
    %v314 = vld [vmem:[#allocation7 + $0xfc] sm:$0xff]
    %v315 = vld [vmem:[#allocation7 + $0x104] sm:$0xf]
    %v316 = vld [vmem:[#allocation7 + $0x108] sm:$0xff]
    %v317 = vld [vmem:[#allocation7 + $0x110] sm:$0xf]
    %v318 = vld [vmem:[#allocation7 + $0x114] sm:$0xff]
    %v319 = vld [vmem:[#allocation7 + $0x11c] sm:$0xf]
    %v320 = vld [vmem:[#allocation7 + $0x120] sm:$0xff]
    %v321 = vld [vmem:[#allocation7 + $0x128] sm:$0xf]
    %v322 = vld [vmem:[#allocation7 + $0x12c] sm:$0xff]
    %v323 = vld [vmem:[#allocation7 + $0x134] sm:$0xf]
    %v324 = vld [vmem:[#allocation7 + $0x138] sm:$0xff]
    %v325 = vld [vmem:[#allocation7 + $0x140] sm:$0xf]
    %v326 = vld [vmem:[#allocation7 + $0x144] sm:$0xff]
    %v327 = vld [vmem:[#allocation7 + $0x14c] sm:$0xf]
    %v328 = vld [vmem:[#allocation7 + $0x150] sm:$0xff]
    %v329 = vld [vmem:[#allocation7 + $0x158] sm:$0xf]
    %v330 = vld [vmem:[#allocation7 + $0x15c] sm:$0xff]
    %v331 = vld [vmem:[#allocation7 + $0x164] sm:$0xf]
    %v332 = vld [vmem:[#allocation7 + $0x168] sm:$0xff]
    %v333 = vld [vmem:[#allocation7 + $0x170] sm:$0xf]
    %v334 = vld [vmem:[#allocation7 + $0x174] sm:$0xff]
    %v335 = vld [vmem:[#allocation7 + $0x17c] sm:$0xf]
    %v336 = vld [vmem:[#allocation7 + $0x180] sm:$0xff]
    %v337 = vld [vmem:[#allocation7 + $0x188] sm:$0xf]
    %v338 = vld [vmem:[#allocation7 + $0x18c] sm:$0xff]
    %v339 = vld [vmem:[#allocation7 + $0x194] sm:$0xf]
    %v340 = vld [vmem:[#allocation7 + $0x198] sm:$0xff]
    %v341 = vld [vmem:[#allocation7 + $0x1a0] sm:$0xf]
    %v342 = vld [vmem:[#allocation7 + $0x1a4] sm:$0xff]
    %v343 = vld [vmem:[#allocation7 + $0x1ac] sm:$0xf]
    %v344 = vld [vmem:[#allocation7 + $0x1b0] sm:$0xff]
    %v345 = vld [vmem:[#allocation7 + $0x1b8] sm:$0xf]
    %v346 = vld [vmem:[#allocation7 + $0x1bc] sm:$0xff]
    %v347 = vld [vmem:[#allocation7 + $0x1c4] sm:$0xf]
    %v348 = vld [vmem:[#allocation7 + $0x1c8] sm:$0xff]
    %v349 = vld [vmem:[#allocation7 + $0x1d0] sm:$0xf]
    %v350 = vld [vmem:[#allocation7 + $0x1d4] sm:$0xff]
    %v351 = vld [vmem:[#allocation7 + $0x1dc] sm:$0xf]
    %v352 = vld [vmem:[#allocation7 + $0x1e0] sm:$0xff]
    %v353 = vld [vmem:[#allocation7 + $0x1e8] sm:$0xf]
    %v354 = vld [vmem:[#allocation7 + $0x1ec] sm:$0xff]
    %v355 = vld [vmem:[#allocation7 + $0x1f4] sm:$0xf]
    %v356 = vld [vmem:[#allocation7 + $0x1f8] sm:$0xff]
    %v357 = vld [vmem:[#allocation7 + $0x200] sm:$0xf]
    %v358 = vld [vmem:[#allocation7 + $0x204] sm:$0xff]
    %v359 = vld [vmem:[#allocation7 + $0x20c] sm:$0xf]
    %v360 = vld [vmem:[#allocation7 + $0x210] sm:$0xff]
    %v361 = vld [vmem:[#allocation7 + $0x218] sm:$0xf]
    %v362 = vld [vmem:[#allocation7 + $0x21c] sm:$0xff]
    %v363 = vld [vmem:[#allocation7 + $0x224] sm:$0xf]
    %v364 = vld [vmem:[#allocation7 + $0x228] sm:$0xff]
    %v365 = vld [vmem:[#allocation7 + $0x230] sm:$0xf]
    %v366 = vld [vmem:[#allocation7 + $0x234] sm:$0xff]
    %v367 = vld [vmem:[#allocation7 + $0x23c] sm:$0xf]
    %v368 = vld [vmem:[#allocation7 + $0x240] sm:$0xff]
    %v369 = vld [vmem:[#allocation7 + $0x248] sm:$0xf]
    %v370 = vld [vmem:[#allocation7 + $0x24c] sm:$0xff]
    %v371 = vld [vmem:[#allocation7 + $0x254] sm:$0xf]
    %v372 = vld [vmem:[%s6] sm:$0x7]
    %v374 = vperm.slane %v372, 0
    %v375 = vperm.slane %v372, 1
    %v376 = vperm.slane %v372, 2
    %v480 = vunpack.c.l.b16 %v272
    %v481 = vunpack.c.h.b16 %v272
    %v482 = vunpack.c.l.b16 %v273
    %v483 = vunpack.c.l.b16 %v274
    %v484 = vunpack.c.h.b16 %v274
    %v485 = vunpack.c.l.b16 %v275
    %v486 = vunpack.c.l.b16 %v276
    %v487 = vunpack.c.h.b16 %v276
    %v488 = vunpack.c.l.b16 %v277
    %v489 = vunpack.c.l.b16 %v278
    %v490 = vunpack.c.h.b16 %v278
    %v491 = vunpack.c.l.b16 %v279
    %v492 = vunpack.c.l.b16 %v280
    %v493 = vunpack.c.h.b16 %v280
    %v494 = vunpack.c.l.b16 %v281
    %v495 = vunpack.c.l.b16 %v282
    %v496 = vunpack.c.h.b16 %v282
    %v497 = vunpack.c.l.b16 %v283
    %v498 = vunpack.c.l.b16 %v284
    %v499 = vunpack.c.h.b16 %v284
    %v500 = vunpack.c.l.b16 %v285
    %v501 = vunpack.c.l.b16 %v286
    %v502 = vunpack.c.h.b16 %v286
    %v503 = vunpack.c.l.b16 %v287
    %v504 = vunpack.c.l.b16 %v288
    %v505 = vunpack.c.h.b16 %v288
    %v506 = vunpack.c.l.b16 %v289
    %v507 = vunpack.c.l.b16 %v290
    %v508 = vunpack.c.h.b16 %v290
    %v509 = vunpack.c.l.b16 %v291
    %v510 = vunpack.c.l.b16 %v292
    %v511 = vunpack.c.h.b16 %v292
    %v512 = vunpack.c.l.b16 %v293
    %v513 = vunpack.c.l.b16 %v294
    %v514 = vunpack.c.h.b16 %v294
    %v515 = vunpack.c.l.b16 %v295
    %v516 = vunpack.c.l.b16 %v296
    %v517 = vunpack.c.h.b16 %v296
    %v518 = vunpack.c.l.b16 %v297
    %v519 = vunpack.c.l.b16 %v298
    %v520 = vunpack.c.h.b16 %v298
    %v521 = vunpack.c.l.b16 %v299
    %v522 = vunpack.c.l.b16 %v300
    %v523 = vunpack.c.h.b16 %v300
    %v524 = vunpack.c.l.b16 %v301
    %v525 = vunpack.c.l.b16 %v302
    %v526 = vunpack.c.h.b16 %v302
    %v527 = vunpack.c.l.b16 %v303
    %v528 = vunpack.c.l.b16 %v304
    %v529 = vunpack.c.h.b16 %v304
    %v530 = vunpack.c.l.b16 %v305
    %v531 = vunpack.c.l.b16 %v306
    %v532 = vunpack.c.h.b16 %v306
    %v533 = vunpack.c.l.b16 %v307
    %v534 = vunpack.c.l.b16 %v308
    %v535 = vunpack.c.h.b16 %v308
    %v536 = vunpack.c.l.b16 %v309
    %v537 = vunpack.c.l.b16 %v310
    %v538 = vunpack.c.h.b16 %v310
    %v539 = vunpack.c.l.b16 %v311
    %v540 = vunpack.c.l.b16 %v312
    %v541 = vunpack.c.h.b16 %v312
    %v542 = vunpack.c.l.b16 %v313
    %v543 = vunpack.c.l.b16 %v314
    %v544 = vunpack.c.h.b16 %v314
    %v545 = vunpack.c.l.b16 %v315
    %v546 = vunpack.c.l.b16 %v316
    %v547 = vunpack.c.h.b16 %v316
    %v548 = vunpack.c.l.b16 %v317
    %v549 = vunpack.c.l.b16 %v318
    %v550 = vunpack.c.h.b16 %v318
    %v551 = vunpack.c.l.b16 %v319
    %v552 = vunpack.c.l.b16 %v320
    %v553 = vunpack.c.h.b16 %v320
    %v554 = vunpack.c.l.b16 %v321
    %v555 = vunpack.c.l.b16 %v322
    %v556 = vunpack.c.h.b16 %v322
    %v557 = vunpack.c.l.b16 %v323
    %v558 = vunpack.c.l.b16 %v324
    %v559 = vunpack.c.h.b16 %v324
    %v560 = vunpack.c.l.b16 %v325
    %v561 = vunpack.c.l.b16 %v326
    %v562 = vunpack.c.h.b16 %v326
    %v563 = vunpack.c.l.b16 %v327
    %v564 = vunpack.c.l.b16 %v328
    %v565 = vunpack.c.h.b16 %v328
    %v566 = vunpack.c.l.b16 %v329
    %v567 = vunpack.c.l.b16 %v330
    %v568 = vunpack.c.h.b16 %v330
    %v569 = vunpack.c.l.b16 %v331
    %v570 = vunpack.c.l.b16 %v332
    %v571 = vunpack.c.h.b16 %v332
    %v572 = vunpack.c.l.b16 %v333
    %v573 = vunpack.c.l.b16 %v334
    %v574 = vunpack.c.h.b16 %v334
    %v575 = vunpack.c.l.b16 %v335
    %v576 = vunpack.c.l.b16 %v336
    %v577 = vunpack.c.h.b16 %v336
    %v578 = vunpack.c.l.b16 %v337
    %v579 = vunpack.c.l.b16 %v338
    %v580 = vunpack.c.h.b16 %v338
    %v581 = vunpack.c.l.b16 %v339
    %v582 = vunpack.c.l.b16 %v340
    %v583 = vunpack.c.h.b16 %v340
    %v584 = vunpack.c.l.b16 %v341
    %v585 = vunpack.c.l.b16 %v342
    %v586 = vunpack.c.h.b16 %v342
    %v587 = vunpack.c.l.b16 %v343
    %v588 = vunpack.c.l.b16 %v344
    %v589 = vunpack.c.h.b16 %v344
    %v590 = vunpack.c.l.b16 %v345
    %v591 = vunpack.c.l.b16 %v346
    %v592 = vunpack.c.h.b16 %v346
    %v593 = vunpack.c.l.b16 %v347
    %v594 = vunpack.c.l.b16 %v348
    %v595 = vunpack.c.h.b16 %v348
    %v596 = vunpack.c.l.b16 %v349
    %v597 = vunpack.c.l.b16 %v350
    %v598 = vunpack.c.h.b16 %v350
    %v599 = vunpack.c.l.b16 %v351
    %v600 = vunpack.c.l.b16 %v352
    %v601 = vunpack.c.h.b16 %v352
    %v602 = vunpack.c.l.b16 %v353
    %v603 = vunpack.c.l.b16 %v354
    %v604 = vunpack.c.h.b16 %v354
    %v605 = vunpack.c.l.b16 %v355
    %v606 = vunpack.c.l.b16 %v356
    %v607 = vunpack.c.h.b16 %v356
    %v608 = vunpack.c.l.b16 %v357
    %v609 = vunpack.c.l.b16 %v358
    %v610 = vunpack.c.h.b16 %v358
    %v611 = vunpack.c.l.b16 %v359
    %v612 = vunpack.c.l.b16 %v360
    %v613 = vunpack.c.h.b16 %v360
    %v614 = vunpack.c.l.b16 %v361
    %v615 = vunpack.c.l.b16 %v362
    %v616 = vunpack.c.h.b16 %v362
    %v617 = vunpack.c.l.b16 %v363
    %v618 = vunpack.c.l.b16 %v364
    %v619 = vunpack.c.h.b16 %v364
    %v620 = vunpack.c.l.b16 %v365
    %v621 = vunpack.c.l.b16 %v366
    %v622 = vunpack.c.h.b16 %v366
    %v623 = vunpack.c.l.b16 %v367
    %v624 = vunpack.c.l.b16 %v368
    %v625 = vunpack.c.h.b16 %v368
    %v626 = vunpack.c.l.b16 %v369
    %v627 = vunpack.c.l.b16 %v370
    %v628 = vunpack.c.h.b16 %v370
    %v629 = vunpack.c.l.b16 %v371
    %v630 = vpack.c.b16 %v483, %v480
    %v631 = vpack.c.b16 %v484, %v481
    %v632 = vpack.c.b16 %v485, %v482
    %v633 = vpack.c.b16 %v489, %v486
    %v634 = vpack.c.b16 %v490, %v487
    %v635 = vpack.c.b16 %v491, %v488
    %v636 = vpack.c.b16 %v495, %v492
    %v637 = vpack.c.b16 %v496, %v493
    %v638 = vpack.c.b16 %v497, %v494
    %v639 = vpack.c.b16 %v501, %v498
    %v640 = vpack.c.b16 %v502, %v499
    %v641 = vpack.c.b16 %v503, %v500
    %v642 = vpack.c.b16 %v507, %v504
    %v643 = vpack.c.b16 %v508, %v505
    %v644 = vpack.c.b16 %v509, %v506
    %v645 = vpack.c.b16 %v513, %v510
    %v646 = vpack.c.b16 %v514, %v511
    %v647 = vpack.c.b16 %v515, %v512
    %v648 = vpack.c.b16 %v519, %v516
    %v649 = vpack.c.b16 %v520, %v517
    %v650 = vpack.c.b16 %v521, %v518
    %v651 = vpack.c.b16 %v525, %v522
    %v652 = vpack.c.b16 %v526, %v523
    %v653 = vpack.c.b16 %v527, %v524
    %v654 = vpack.c.b16 %v531, %v528
    %v655 = vpack.c.b16 %v532, %v529
    %v656 = vpack.c.b16 %v533, %v530
    %v657 = vpack.c.b16 %v537, %v534
    %v658 = vpack.c.b16 %v538, %v535
    %v659 = vpack.c.b16 %v539, %v536
    %v660 = vpack.c.b16 %v543, %v540
    %v661 = vpack.c.b16 %v544, %v541
    %v662 = vpack.c.b16 %v545, %v542
    %v663 = vpack.c.b16 %v549, %v546
    %v664 = vpack.c.b16 %v550, %v547
    %v665 = vpack.c.b16 %v551, %v548
    %v666 = vpack.c.b16 %v555, %v552
    %v667 = vpack.c.b16 %v556, %v553
    %v668 = vpack.c.b16 %v557, %v554
    %v669 = vpack.c.b16 %v561, %v558
    %v670 = vpack.c.b16 %v562, %v559
    %v671 = vpack.c.b16 %v563, %v560
    %v672 = vpack.c.b16 %v567, %v564
    %v673 = vpack.c.b16 %v568, %v565
    %v674 = vpack.c.b16 %v569, %v566
    %v675 = vpack.c.b16 %v573, %v570
    %v676 = vpack.c.b16 %v574, %v571
    %v677 = vpack.c.b16 %v575, %v572
    %v678 = vpack.c.b16 %v579, %v576
    %v679 = vpack.c.b16 %v580, %v577
    %v680 = vpack.c.b16 %v581, %v578
    %v681 = vpack.c.b16 %v585, %v582
    %v682 = vpack.c.b16 %v586, %v583
    %v683 = vpack.c.b16 %v587, %v584
    %v684 = vpack.c.b16 %v591, %v588
    %v685 = vpack.c.b16 %v592, %v589
    %v686 = vpack.c.b16 %v593, %v590
    %v687 = vpack.c.b16 %v597, %v594
    %v688 = vpack.c.b16 %v598, %v595
    %v689 = vpack.c.b16 %v599, %v596
    %v690 = vpack.c.b16 %v603, %v600
    %v691 = vpack.c.b16 %v604, %v601
    %v692 = vpack.c.b16 %v605, %v602
    %v693 = vpack.c.b16 %v609, %v606
    %v694 = vpack.c.b16 %v610, %v607
    %v695 = vpack.c.b16 %v611, %v608
    %v696 = vpack.c.b16 %v615, %v612
    %v697 = vpack.c.b16 %v616, %v613
    %v698 = vpack.c.b16 %v617, %v614
    %v699 = vpack.c.b16 %v621, %v618
    %v700 = vpack.c.b16 %v622, %v619
    %v701 = vpack.c.b16 %v623, %v620
    %v702 = vpack.c.b16 %v627, %v624
    %v703 = vpack.c.b16 %v628, %v625
    %v704 = vpack.c.b16 %v629, %v626
    %v781 = vsel %vm194, %v271, 0
    %783 = vmatpush.bf16.msra.mxu0 %v651
    %784 = vmatpush.bf16.msra.mxu0 %v648
    %785 = vmatpush.bf16.msra.mxu0 %v645
    %786 = vmatpush.bf16.msra.mxu0 %v642
    %787 = vmatpush.bf16.msra.mxu0 %v639
    %788 = vmatpush.bf16.msra.mxu0 %v636
    %789 = vmatpush.bf16.msra.mxu0 %v633
    %790 = vmatpush.bf16.msra.mxu0 %v630
    %791 = vmatmul.bf16.gmra.mxu0 %v268
    %v792 = vpop.f32.mrf.mxu0
    %v793 = vadd.f32 %v374, %v792
    %v794 = vpop.f32.mrf.mxu0
    %795 = vdwg.mxu0
    %796 = vmatpush.bf16.msra.mxu0 %v675
    %797 = vmatpush.bf16.msra.mxu0 %v672
    %798 = vmatpush.bf16.msra.mxu0 %v669
    %799 = vmatpush.bf16.msra.mxu0 %v666
    %800 = vmatpush.bf16.msra.mxu0 %v663
    %801 = vmatpush.bf16.msra.mxu0 %v660
    %802 = vmatpush.bf16.msra.mxu0 %v657
    %803 = vmatpush.bf16.msra.mxu0 %v654
    %804 = vmatmul.bf16.gmra.mxu0 %v269
    %v805 = vpop.f32.mrf.mxu0
    %v806 = vadd.f32 %v793, %v805
    %v807 = vpop.f32.mrf.mxu0
    %808 = vdwg.mxu0
    %809 = vmatpush.bf16.msra.mxu0 %v699
    %810 = vmatpush.bf16.msra.mxu0 %v696
    %811 = vmatpush.bf16.msra.mxu0 %v693
    %812 = vmatpush.bf16.msra.mxu0 %v690
    %813 = vmatpush.bf16.msra.mxu0 %v687
    %814 = vmatpush.bf16.msra.mxu0 %v684
    %815 = vmatpush.bf16.msra.mxu0 %v681
    %816 = vmatpush.bf16.msra.mxu0 %v678
    %817 = vmatmul.bf16.gmra.mxu0 %v270
    %v818 = vpop.f32.mrf.mxu0
    %v819 = vadd.f32 %v806, %v818
    %v820 = vpop.f32.mrf.mxu0
    %821 = vdwg.mxu0
    %822 = vmatpush.bf16.msra.mxu0 0
    %823 = vmatpush.bf16.msra.mxu0 0
    %824 = vmatpush.bf16.msra.mxu0 0
    %825 = vmatpush.bf16.msra.mxu0 0
    %826 = vmatpush.bf16.msra.mxu0 0
    %827 = vmatpush.bf16.msra.mxu0 0
    %828 = vmatpush.bf16.msra.mxu0 0
    %829 = vmatpush.bf16.msra.mxu0 %v702
    %830 = vmatmul.bf16.gmra.mxu0 %v781
    %v831 = vpop.f32.mrf.mxu0
    %v832 = vadd.f32 %v819, %v831
    %v833 = vpop.f32.mrf.mxu0
    %834 = vdwg.mxu0
    %835 = vmatpush.bf16.msra.mxu0 %v652
    %836 = vmatpush.bf16.msra.mxu0 %v649
    %837 = vmatpush.bf16.msra.mxu0 %v646
    %838 = vmatpush.bf16.msra.mxu0 %v643
    %839 = vmatpush.bf16.msra.mxu0 %v640
    %840 = vmatpush.bf16.msra.mxu0 %v637
    %841 = vmatpush.bf16.msra.mxu0 %v634
    %842 = vmatpush.bf16.msra.mxu0 %v631
    %843 = vmatmul.bf16.gmra.mxu0 %v268
    %v844 = vpop.f32.mrf.mxu0
    %v845 = vadd.f32 %v375, %v844
    %v846 = vpop.f32.mrf.mxu0
    %847 = vdwg.mxu0
    %848 = vmatpush.bf16.msra.mxu0 %v676
    %849 = vmatpush.bf16.msra.mxu0 %v673
    %850 = vmatpush.bf16.msra.mxu0 %v670
    %851 = vmatpush.bf16.msra.mxu0 %v667
    %852 = vmatpush.bf16.msra.mxu0 %v664
    %853 = vmatpush.bf16.msra.mxu0 %v661
    %854 = vmatpush.bf16.msra.mxu0 %v658
    %855 = vmatpush.bf16.msra.mxu0 %v655
    %856 = vmatmul.bf16.gmra.mxu0 %v269
    %v857 = vpop.f32.mrf.mxu0
    %v858 = vadd.f32 %v845, %v857
    %v859 = vpop.f32.mrf.mxu0
    %860 = vdwg.mxu0
    %861 = vmatpush.bf16.msra.mxu0 %v700
    %862 = vmatpush.bf16.msra.mxu0 %v697
    %863 = vmatpush.bf16.msra.mxu0 %v694
    %864 = vmatpush.bf16.msra.mxu0 %v691
    %865 = vmatpush.bf16.msra.mxu0 %v688
    %866 = vmatpush.bf16.msra.mxu0 %v685
    %867 = vmatpush.bf16.msra.mxu0 %v682
    %868 = vmatpush.bf16.msra.mxu0 %v679
    %869 = vmatmul.bf16.gmra.mxu0 %v270
    %v870 = vpop.f32.mrf.mxu0
    %v871 = vadd.f32 %v858, %v870
    %v872 = vpop.f32.mrf.mxu0
    %873 = vdwg.mxu0
    %874 = vmatpush.bf16.msra.mxu0 0
    %875 = vmatpush.bf16.msra.mxu0 0
    %876 = vmatpush.bf16.msra.mxu0 0
    %877 = vmatpush.bf16.msra.mxu0 0
    %878 = vmatpush.bf16.msra.mxu0 0
    %879 = vmatpush.bf16.msra.mxu0 0
    %880 = vmatpush.bf16.msra.mxu0 0
    %881 = vmatpush.bf16.msra.mxu0 %v703
    %882 = vmatmul.bf16.gmra.mxu0 %v781
    %v883 = vpop.f32.mrf.mxu0
    %v884 = vadd.f32 %v871, %v883
    %v885 = vpop.f32.mrf.mxu0
    %886 = vdwg.mxu0
    %887 = vmatpush.bf16.msra.mxu0 %v653
    %888 = vmatpush.bf16.msra.mxu0 %v650
    %889 = vmatpush.bf16.msra.mxu0 %v647
    %890 = vmatpush.bf16.msra.mxu0 %v644
    %891 = vmatpush.bf16.msra.mxu0 %v641
    %892 = vmatpush.bf16.msra.mxu0 %v638
    %893 = vmatpush.bf16.msra.mxu0 %v635
    %894 = vmatpush.bf16.msra.mxu0 %v632
    %895 = vmatmul.bf16.gmra.mxu0 %v268
    %v896 = vpop.f32.mrf.mxu0
    %v897 = vadd.f32 %v376, %v896
    %v898 = vpop.f32.mrf.mxu0
    %899 = vdwg.mxu0
    %900 = vmatpush.bf16.msra.mxu0 %v677
    %901 = vmatpush.bf16.msra.mxu0 %v674
    %902 = vmatpush.bf16.msra.mxu0 %v671
    %903 = vmatpush.bf16.msra.mxu0 %v668
    %904 = vmatpush.bf16.msra.mxu0 %v665
    %905 = vmatpush.bf16.msra.mxu0 %v662
    %906 = vmatpush.bf16.msra.mxu0 %v659
    %907 = vmatpush.bf16.msra.mxu0 %v656
    %908 = vmatmul.bf16.gmra.mxu0 %v269
    %v909 = vpop.f32.mrf.mxu0
    %v910 = vadd.f32 %v897, %v909
    %v911 = vpop.f32.mrf.mxu0
    %912 = vdwg.mxu0
    %913 = vmatpush.bf16.msra.mxu0 %v701
    %914 = vmatpush.bf16.msra.mxu0 %v698
    %915 = vmatpush.bf16.msra.mxu0 %v695
    %916 = vmatpush.bf16.msra.mxu0 %v692
    %917 = vmatpush.bf16.msra.mxu0 %v689
    %918 = vmatpush.bf16.msra.mxu0 %v686
    %919 = vmatpush.bf16.msra.mxu0 %v683
    %920 = vmatpush.bf16.msra.mxu0 %v680
    %921 = vmatmul.bf16.gmra.mxu0 %v270
    %v922 = vpop.f32.mrf.mxu0
    %v923 = vadd.f32 %v910, %v922
    %v924 = vpop.f32.mrf.mxu0
    %925 = vdwg.mxu0
    %926 = vmatpush.bf16.msra.mxu0 0
    %927 = vmatpush.bf16.msra.mxu0 0
    %928 = vmatpush.bf16.msra.mxu0 0
    %929 = vmatpush.bf16.msra.mxu0 0
    %930 = vmatpush.bf16.msra.mxu0 0
    %931 = vmatpush.bf16.msra.mxu0 0
    %932 = vmatpush.bf16.msra.mxu0 0
    %933 = vmatpush.bf16.msra.mxu0 %v704
    %934 = vmatmul.bf16.gmra.mxu0 %v781
    %v935 = vpop.f32.mrf.mxu0
    %v936 = vadd.f32 %v923, %v935
    %v937 = vpop.f32.mrf.mxu0
    %938 = vdwg.mxu0
    %v939 = vmax.f32 %v832, 0.0
    %v940 = vmax.f32 %v884, 0.0
    %v941 = vmax.f32 %v936, 0.0
    %v942 = vld [vmem:[#allocation8] sm:$0x7]
    %v944 = vperm.slane %v942, 0
    %v945 = vperm.slane %v942, 1
    %v946 = vperm.slane %v942, 2
    %v950 = vmul.f32 %v939, %v944
    %v951 = vmul.f32 %v940, %v945
    %v952 = vmul.f32 %v941, %v946
    %v953 = vadd.f32 %v950, %v951
    %vm954 = vcmask 359424
    %v955 = vsel %vm954, %v952, 0.0
    %v956 = vadd.f32 %v953, %v955
    %957 = vadd.xlane.f32.xlu0 %v956
    %v958 = vpop.xlane.xlu0 %957
    %v959 = vld [vmem:[#allocation2] sm:$0x1]
    %v961 = vperm.slane %v959, 0
    %v963 = vadd.f32 %v958, %v961
    %vm964 = vcmask 7168
    %965 = vst.msk [vmem:[%s9] sm:$0xff] %vm964, %v963
    // Predicated region
    $region54: #{tpu_custom_call.1} parent=1 // pred_check
      _
    $region55: #{tpu_custom_call.1} parent=1 // pred_check_branch
      %967 = sbr.rel (0) target = $region57
    $region56: #{tpu_custom_call.1} parent=1 // pred_region
      _
    $region57: #{tpu_custom_call.1} parent=1 // pred_fallthru
      _
    // Predicated region
    $region58: #{tpu_custom_call.1} parent=1 // pred_check
      _
    $region59: #{tpu_custom_call.1} parent=1 // pred_check_branch
      %969 = sbr.rel (0) target = $region61
    $region60: #{tpu_custom_call.1} parent=1 // pred_region
      _
    $region61: #{tpu_custom_call.1} parent=1 // pred_fallthru
      _
    %970 = vsyncpa [#allocation4], 1
    %971 = vsyncpa [#allocation6], 1
    %972 = vsyncpa [#allocation9], 1

</llo_original>
